<compile_context>
chip_gen: v7x
topology: tpu7x:2x2x1
jax: 0.10.0
libtpu: 0.0.40
codegen_flags: <defaults>
</compile_context>

<pallas_src>
import functools
import math

import jax
import jax.numpy as jnp
from jax import lax
from jax.experimental import pallas as pl
from jax.experimental.pallas import tpu as pltpu


def build_pe(d_model: int, max_len: int) -> jnp.ndarray:
    """Sinusoidal PE buffer, shape (max_len, 1, d_model), float32 (matches torch)."""
    position = jnp.arange(0, max_len, dtype=jnp.float32)[:, None]
    div_term = jnp.exp(
        jnp.arange(0, d_model, 2, dtype=jnp.float32) * (-math.log(10000.0) / d_model)
    )
    angles = position * div_term                                  # (max_len, d_model//2)
    pe = jnp.zeros((max_len, d_model), dtype=jnp.float32)
    pe = pe.at[:, 0::2].set(jnp.sin(angles))
    pe = pe.at[:, 1::2].set(jnp.cos(angles))
    return pe[:, None, :]                                         # (max_len, 1, d_model)


def _round_up(a: int, b: int) -> int:
    return -(-a // b) * b


def _wrap_i32(v: int) -> int:
    """Python int -> value with int32 wrap-around semantics (for hash strides)."""
    v &= 0xFFFFFFFF
    return v - (1 << 32) if v >= (1 << 31) else v


def _dropout(y, seed_ref, lin, *, threshold_u32, inv_keep, use_hw_prng):
    """Inverted dropout. `lin` is the int32 global element index (None for HW PRNG)."""
    if use_hw_prng:
        # One HW draw per element instead of ~10 VALU int ops; mask is tiling-dependent.
        pltpu.prng_seed(seed_ref[0] + pl.program_id(0) * 1013904223)
        u = pltpu.bitcast(pltpu.prng_random_bits(y.shape), jnp.uint32)
    else:
        # Stateless 2-round counter-hash of the global element index (tiling-independent).
        u = lin.astype(jnp.uint32) ^ (seed_ref[0].astype(jnp.uint32) * jnp.uint32(0x9E3779B9))
        u = u ^ (u >> jnp.uint32(16))
        u = u * jnp.uint32(0x7FEB352D)
        u = u ^ (u >> jnp.uint32(15))
    keep = u >= jnp.uint32(threshold_u32)                         # drop with prob ~= p
    return jnp.where(keep, y * inv_keep, jnp.zeros_like(y))


def _pe_kernel_2d(seed_ref, x_ref, pe_ref, o_ref, *, batch, threshold_u32,
                  inv_keep, training, use_hw_prng):
    # Lane-dense path. x_ref/o_ref: (tsq, B*D); pe_ref: (tsq, D) float32.
    x = x_ref[...]
    pe = pe_ref[...].astype(x.dtype)                              # tiny tile; cast is free filler
    if batch > 1:
        pe = jnp.concatenate([pe] * batch, axis=-1)               # lane-replicate over batch
    y = x + pe
    if training and threshold_u32 > 0:
        lin = None
        if not use_hw_prng:
            rows, cols = y.shape
            base = pl.program_id(0) * _wrap_i32(rows * cols)      # scalar tile offset
            r = lax.broadcasted_iota(jnp.int32, y.shape, 0)
            c = lax.broadcasted_iota(jnp.int32, y.shape, 1)
            lin = base + r * cols + c                             # global element index
        y = _dropout(y, seed_ref, lin, threshold_u32=threshold_u32,
                     inv_keep=inv_keep, use_hw_prng=use_hw_prng)
    o_ref[...] = y.astype(o_ref.dtype)


def _pe_kernel_3d(seed_ref, x_ref, pe_ref, o_ref, *, threshold_u32,
                  inv_keep, training, use_hw_prng):
    # Production-layout path (B%8==0, D%128==0). x_ref: (tsq, B, D); pe_ref: (tsq, 1, D) f32.
    x = x_ref[...]
    y = x + pe_ref[...].astype(x.dtype)                           # sublane-broadcast add
    if training and threshold_u32 > 0:
        lin = None
        if not use_hw_prng:
            tsq, B, D = y.shape
            base = pl.program_id(0) * _wrap_i32(tsq * B * D)
            s = lax.broadcasted_iota(jnp.int32, y.shape, 0)
            b = lax.broadcasted_iota(jnp.int32, y.shape, 1)
            d = lax.broadcasted_iota(jnp.int32, y.shape, 2)
            lin = base + (s * B + b) * D + d                      # same stream as 2D path
        y = _dropout(y, seed_ref, lin, threshold_u32=threshold_u32,
                     inv_keep=inv_keep, use_hw_prng=use_hw_prng)
    o_ref[...] = y.astype(o_ref.dtype)


def _vmem_budget_bytes() -> int:
    # Scoped-VMEM defaults: ~16 MiB (v5e & older), ~32 MiB (v6e/v7x). Leave headroom.
    try:
        kind = jax.devices()[0].device_kind.lower()
    except Exception:
        kind = ""
    if any(t in kind for t in ("v6", "v7", "7x")):
        return 24 * 1024 * 1024
    return 12 * 1024 * 1024


def _choose_seq_tile(S: int, row_bytes: int, align: int, budget: int) -> int:
    tsq = max(1, min(S, budget // max(1, row_bytes)))
    # Keep >= 2 grid steps when possible so v7x can shard the "parallel" grid axis
    # across its 2 TensorCores (costs only ~0.35us/step on single-core chips).
    if tsq >= S and S > 1:
        tsq = -(-S // 2)
    if align > 1 and tsq < S:
        tsq = (tsq // align) * align
        if tsq == 0:
            tsq = S if S < align else align
    return max(1, min(tsq, S))


def positional_encoding_forward(x, pe, *, p=0.1, training=False, seed=0,
                                seq_tile=None, vmem_budget_bytes=None,
                                use_hw_prng=False):
    """x: (S, B, D); pe: (max_len, 1, D) float32 buffer. Returns dropout(x + pe[:S])."""
    S, B, D = x.shape
    assert pe.shape[0] >= S and pe.shape[-1] == D
    itemsize = jnp.dtype(x.dtype).itemsize
    sub = max(8, 32 // itemsize)                                  # sublane multiple for x dtype
    budget = _vmem_budget_bytes() if vmem_budget_bytes is None else int(vmem_budget_bytes)

    # Lane-dense 2D view when the (B, D) slab would be sublane/lane padded.
    use_2d = (B % 8 != 0) or (D % 128 != 0)

    # Padded-VMEM bytes per sequence row: x in + x out + pe tile, each double-buffered.
    if use_2d:
        x_row = _round_up(B * D, 128) * itemsize
        pe_row = _round_up(D, 128) * 4
        align = sub
    else:
        x_row = _round_up(B, sub) * _round_up(D, 128) * itemsize
        pe_row = 8 * _round_up(D, 128) * 4                        # (tsq,1,D) f32 pads sublane to 8
        align = 1
    row_bytes = 2 * (2 * x_row + pe_row)

    if seq_tile is not None:
        tsq = max(1, min(int(seq_tile), S))
    else:
        tsq = _choose_seq_tile(S, row_bytes, align, budget)
    grid = (pl.cdiv(S, tsq),)                                     # ragged S supported

    thr32 = min(int(round(float(p) * (1 << 32))), (1 << 32) - 1) if float(p) > 0.0 else 0
    inv_keep = (1.0 / (1.0 - float(p))) if float(p) < 1.0 else 0.0
    seed_arr = jnp.asarray([seed], dtype=jnp.int32)

    cost = pl.CostEstimate(flops=S * B * D, transcendentals=0,
                           bytes_accessed=2 * S * B * D * itemsize + S * D * 4)
    cparams = pltpu.CompilerParams(dimension_semantics=("parallel",))

    if use_2d:
        pe_2d = pe.reshape(pe.shape[0], D)                        # metadata-only reshape
        if tsq % 8 != 0:
            # Here tsq == S (chooser invariant); slice so pe's block dim equals its full extent.
            pe_2d = pe_2d[:S]
        kernel = functools.partial(_pe_kernel_2d, batch=B, threshold_u32=thr32,
                                   inv_keep=inv_keep, training=bool(training),
                                   use_hw_prng=bool(use_hw_prng))
        out2d = pl.pallas_call(
            kernel,
            out_shape=jax.ShapeDtypeStruct((S, B * D), x.dtype),
            grid_spec=pl.GridSpec(
                grid=grid,
                in_specs=[
                    pl.BlockSpec(memory_space=pltpu.MemorySpace.SMEM),   # seed scalar
                    pl.BlockSpec((tsq, B * D), lambda i: (i, 0)),        # x tile (lane-dense)
                    pl.BlockSpec((tsq, D), lambda i: (i, 0)),            # pe tile
                ],
                out_specs=pl.BlockSpec((tsq, B * D), lambda i: (i, 0)),
            ),
            compiler_params=cparams,
            cost_estimate=cost,
        )(seed_arr, x.reshape(S, B * D), pe_2d)
        return out2d.reshape(S, B, D)

    pe_3d = pe.reshape(pe.shape[0], 1, D)
    kernel = functools.partial(_pe_kernel_3d, threshold_u32=thr32, inv_keep=inv_keep,
                               training=bool(training), use_hw_prng=bool(use_hw_prng))
    return pl.pallas_call(
        kernel,
        out_shape=jax.ShapeDtypeStruct((S, B, D), x.dtype),
        grid_spec=pl.GridSpec(
            grid=grid,
            in_specs=[
                pl.BlockSpec(memory_space=pltpu.MemorySpace.SMEM),       # seed scalar
                pl.BlockSpec((tsq, B, D), lambda i: (i, 0, 0)),          # x tile
                pl.BlockSpec((tsq, 1, D), lambda i: (i, 0, 0)),          # pe tile (broadcast over B)
            ],
            out_specs=pl.BlockSpec((tsq, B, D), lambda i: (i, 0, 0)),
        ),
        compiler_params=cparams,
        cost_estimate=cost,
    )(seed_arr, x, pe_3d)


if __name__ == "__main__":
    # Small shapes consistent with the module: seq=8, batch=2, d_model=32.
    S, B, D = 8, 2, 32
    max_len = 64   # module default is 5000, but only pe[:S] is ever used

    key = jax.random.PRNGKey(0)
    x = jax.random.normal(key, (S, B, D), dtype=jnp.float32)
    pe = build_pe(D, max_len)

    # Eval-mode forward (dropout == identity) — lane-dense 2D path (B<8, D<128).
    out = jax.block_until_ready(positional_encoding_forward(x, pe, p=0.1, training=False))
    ref = x + pe[:S]
    assert jnp.allclose(out, ref, atol=1e-6), "eval mismatch vs reference"

    # Multi-tile eval (grid > 1) exercising the pipelined path.
    S2 = 64
    x2 = jax.random.normal(jax.random.PRNGKey(1), (S2, B, D), dtype=jnp.float32)
    out2 = jax.block_until_ready(
        positional_encoding_forward(x2, pe, p=0.1, training=False, seq_tile=16))
    assert jnp.allclose(out2, x2 + pe[:S2], atol=1e-6), "multi-tile eval mismatch"

    # Production-layout 3D path (B % 8 == 0, D % 128 == 0), auto tile sizing (grid >= 2).
    S3, B3, D3 = 16, 8, 128
    pe3 = build_pe(D3, 32)
    x3 = jax.random.normal(jax.random.PRNGKey(2), (S3, B3, D3), dtype=jnp.float32)
    out3 = jax.block_until_ready(positional_encoding_forward(x3, pe3, p=0.1, training=False))
    assert jnp.allclose(out3, x3 + pe3[:S3], atol=1e-6), "3D-path eval mismatch"

    # Training mode (counter-hash dropout): every element is 0 or (x+pe)/(1-p).
    p_drop = 0.5
    out_tr = jax.block_until_ready(
        positional_encoding_forward(x, pe, p=p_drop, training=True, seed=123))
    scaled = ref / (1.0 - p_drop)
    ok = jnp.isclose(out_tr, 0.0, atol=1e-6) | jnp.isclose(out_tr, scaled, rtol=1e-5, atol=1e-5)
    assert bool(jnp.all(ok)), "dropout structure mismatch (2D path)"

    out_tr3 = jax.block_until_ready(
        positional_encoding_forward(x3, pe3, p=p_drop, training=True, seed=11))
    scaled3 = (x3 + pe3[:S3]) / (1.0 - p_drop)
    ok3 = jnp.isclose(out_tr3, 0.0, atol=1e-6) | jnp.isclose(out_tr3, scaled3, rtol=1e-5, atol=1e-5)
    assert bool(jnp.all(ok3)), "dropout structure mismatch (3D path)"

    # Optional HW-PRNG training fast path; skip silently if this build can't lower it.
    out_hw = None
    try:
        out_hw = jax.block_until_ready(
            positional_encoding_forward(x, pe, p=p_drop, training=True, seed=7,
                                        use_hw_prng=True))
    except Exception:
        # TODO(synk): HW PRNG unavailable in this environment; counter-hash path covers training.
        out_hw = None
    if out_hw is not None:
        ok_hw = jnp.isclose(out_hw, 0.0, atol=1e-6) | jnp.isclose(out_hw, scaled, rtol=1e-5, atol=1e-5)
        assert bool(jnp.all(ok_hw)), "dropout structure mismatch (HW PRNG path)"

    print("KERNEL_OK")
</pallas_src>

<mosaic_0001>
module attributes {stable_mosaic.version = 11 : i64} {
  func.func @_pe_kernel_2d(%arg0: i32, %arg1: memref<1xi32, #tpu.memory_space<smem>>, %arg2: memref<8x64xf32, #tpu.memory_space<vmem>>, %arg3: memref<8x32xf32, #tpu.memory_space<vmem>>, %arg4: memref<8x64xf32, #tpu.memory_space<vmem>>) attributes {dimension_semantics = [#tpu.dimension_semantics<parallel>], iteration_bounds = array<i64: 1>, scalar_prefetch = 0 : i64, scratch_operands = 0 : i64, tpu.core_type = #tpu.core_type<tc>, window_params = [{transform_indices = @transform_0, window_bounds = array<i64: 1>}, {transform_indices = @transform_1, window_bounds = array<i64: 8, 64>}, {transform_indices = @transform_2, window_bounds = array<i64: 8, 32>}, {transform_indices = @transform_3, window_bounds = array<i64: 8, 64>}]} {
    %c0 = arith.constant 0 : index
    %c0_0 = arith.constant 0 : index
    %0 = vector.load %arg2[%c0, %c0_0] : memref<8x64xf32, #tpu.memory_space<vmem>>, vector<8x64xf32>
    %c0_1 = arith.constant 0 : index
    %c0_2 = arith.constant 0 : index
    %1 = vector.load %arg3[%c0_1, %c0_2] : memref<8x32xf32, #tpu.memory_space<vmem>>, vector<8x32xf32>
    %2 = tpu.concatenate %1, %1 in 1 : vector<8x32xf32>, vector<8x32xf32> -> vector<8x64xf32>
    %3 = arith.addf %0, %2 : vector<8x64xf32>
    %c0_3 = arith.constant 0 : index
    %c0_4 = arith.constant 0 : index
    %4 = vector.load %arg4[%c0_3, %c0_4] : memref<8x64xf32, #tpu.memory_space<vmem>>, vector<8x64xf32>
    tpu.vector_store %arg4[%c0_3, %c0_4], %3 {strides = array<i32>} : memref<8x64xf32, #tpu.memory_space<vmem>>, vector<8x64xf32>,
    return
  }
  func.func @transform_0(%arg0: i32) -> i32 {
    %c0_i32 = arith.constant 0 : i32
    %c0_i32_0 = arith.constant 0 : i32
    return %c0_i32 : i32
  }
  func.func @transform_1(%arg0: i32) -> (i32, i32) {
    %c0_i32 = arith.constant 0 : i32
    %c0_i32_0 = arith.constant 0 : i32
    return %arg0, %c0_i32 : i32, i32
  }
  func.func @transform_2(%arg0: i32) -> (i32, i32) {
    %c0_i32 = arith.constant 0 : i32
    %c0_i32_0 = arith.constant 0 : i32
    return %arg0, %c0_i32 : i32, i32
  }
  func.func @transform_3(%arg0: i32) -> (i32, i32) {
    %c0_i32 = arith.constant 0 : i32
    %c0_i32_0 = arith.constant 0 : i32
    return %arg0, %c0_i32 : i32, i32
  }
}

</mosaic_0001>

<llo_original>
// kernel: tpu_custom_call.1
$region0: #{tpu_custom_call.1}
  #allocation0 [shape = 'u32[]', space=smem, size = 0x4, offset = 0x4, fixed_abs, tag = 'smem constant byte address 0x4 - core index']
  #allocation1 [shape = 'u32[144,128]{1,0:T(1,128)}', space=vmem, size = 0x12000, scoped, tag = 'internal scratch']
  #allocation2 [shape = 's32[1]{0:T(128)S(6)}', space=smem, size = 0x200, scoped, tag = 'scoped memory for tpu_custom_call.1']
  %s0 = inlined_call_operand.<no memory space> [shape: s32[1], index: 0, kind: input, shape index: {}]
  %s1 = inlined_call_operand.vmem [shape: f32[8,64], index: 1, kind: input, shape index: {}]
  %s2 = inlined_call_operand.vmem [shape: f32[64,32], index: 2, kind: input, shape index: {}]
  %s3 = inlined_call_operand.hbm [shape: f32[8,64], index: 3, kind: output, shape index: {}]
  %s4 = sld [smem:[#allocation0]]
  $region22: #{tpu_custom_call.1} parent=0
    _
  %s6 = ssub.s32 1, %s4
  %s7 = scalar_select 0, %s6, %s4
  %8 = sst [smem:[#allocation2]] %s0
  $region1: #{tpu_custom_call.1} parent=0
    #allocation3 [shape = 'u8[4096]{0}', space=vmem, size = 0x1000, scoped, tag = 'output window, operand 0, single buffered']
    #allocation4 [shape = 's32[1]{0}', space=sflag, size = 0x4, scoped, tag = 'scoped memory for tpu_custom_call.1']
    %9 = vsyncpa [#allocation4], 0
    // Predicated region
    $region2: #{tpu_custom_call.1} parent=1 // pred_check
      _
    $region3: #{tpu_custom_call.1} parent=1 // pred_check_branch
      %11 = sbr.rel (0) target = $region5
    $region4: #{tpu_custom_call.1} parent=1 // pred_region
      _
    $region5: #{tpu_custom_call.1} parent=1 // pred_fallthru
      _
    // Predicated region
    $region6: #{tpu_custom_call.1} parent=1 // pred_check
      _
    $region7: #{tpu_custom_call.1} parent=1 // pred_check_branch
      %13 = sbr.rel (0) target = $region9
    $region8: #{tpu_custom_call.1} parent=1 // pred_region
      _
    $region9: #{tpu_custom_call.1} parent=1 // pred_fallthru
      _
    // Predicated region
    $region10: #{tpu_custom_call.1} parent=1 // pred_check
      _
    $region11: #{tpu_custom_call.1} parent=1 // pred_check_branch
      %15 = sbr.rel (0) target = $region13
    $region12: #{tpu_custom_call.1} parent=1 // pred_region
      _
    $region13: #{tpu_custom_call.1} parent=1 // pred_fallthru
      _
    %v16 = vld [vmem:[%s1] sm:$0xff]
    %v17 = vld [vmem:[%s2] sm:$0xff]
    %19 = vrot.lane.b32.xlu0 %v17, 32
    %v20 = vpop.permute.xlu0 %19
    %vm22 = vcmask 261120
    %v23 = vsel %vm22, %v17, %v20
    %v24 = vadd.f32 %v16, %v23
    %vm25 = vcmask 523264
    %26 = vst.msk [vmem:[#allocation3] sm:$0xff] %vm25, %v24
    // Predicated region
    $region14: #{tpu_custom_call.1} parent=1 // pred_check
      _
    $region15: #{tpu_custom_call.1} parent=1 // pred_check_branch
      %28 = sbr.rel (0) target = $region17
    $region16: #{tpu_custom_call.1} parent=1 // pred_region
      %s30 = ssub.s32 128, 128
      %31 = vsyncadd [#allocation4], %s30
      %s33 = sshll.u32 [#allocation3], 4
      %s34 = int_to_ptr.vmem [resolvable:$true] %s33
      %36 = dma.vmem_to_hbm [thread:$0]  %s34, 128, %s3, [#allocation4]
    $region17: #{tpu_custom_call.1} parent=1 // pred_fallthru
      _
    // Predicated region
    $region18: #{tpu_custom_call.1} parent=1 // pred_check
      _
    $region19: #{tpu_custom_call.1} parent=1 // pred_check_branch
      %38 = sbr.rel (0) target = $region21
    $region20: #{tpu_custom_call.1} parent=1 // pred_region
      %39 = dma.done [#allocation4], 128
    $region21: #{tpu_custom_call.1} parent=1 // pred_fallthru
      _
    %40 = vsyncpa [#allocation4], 1

</llo_original>
